<compile_context>
chip_gen: v7x
topology: tpu7x:2x2x1
jax: 0.10.0
libtpu: 0.0.40
codegen_flags: <defaults>
</compile_context>

<pallas_src>
import functools

import jax
import jax.numpy as jnp
from jax.experimental import pallas as pl
from jax.experimental.pallas import tpu as pltpu

_LANE = 128            # TPU lane width (last block dim)
_SUBLANE = 8           # f32 sublane packing (second-to-last block dim multiple)
_MAX_TILE_ROWS = 1024  # 1024 * 128 * 4B = 512 KiB per block buffer


def _round_up(a: int, b: int) -> int:
    return (a + b - 1) // b * b


def _cdiv(a: int, b: int) -> int:
    return (a + b - 1) // b


def _quantizer_kernel(x_ref, o_ref, mn_ref, mx_ref, *, q_max):
    """Two-phase fused kernel.  grid = (C, 2, NT).

    x_ref, o_ref : (TR, 128) tile of the current channel (channel dim squeezed)
    mn_ref/mx_ref: (1, 1) f32 VMEM scratch, running per-channel min / max
    """
    phase = pl.program_id(1)
    ni = pl.program_id(2)

    # Upcast once per tile: keeps stats + round/clip math in f32 (matters for bf16
    # inputs, no-op for f32).
    x = x_ref[...].astype(jnp.float32)

    @pl.when(phase == 0)
    def _reduce_phase():
        @pl.when(ni == 0)
        def _init():
            mn_ref[...] = jnp.full((1, 1), jnp.inf, jnp.float32)
            mx_ref[...] = jnp.full((1, 1), -jnp.inf, jnp.float32)

        mn_ref[...] = jnp.minimum(mn_ref[...], jnp.min(x, keepdims=True))
        mx_ref[...] = jnp.maximum(mx_ref[...], jnp.max(x, keepdims=True))

    @pl.when(phase == 1)
    def _quant_phase():
        x_min = mn_ref[...]                                   # (1, 1)
        x_max = mx_ref[...]                                   # (1, 1)
        scale = jnp.maximum(x_max - x_min, 1e-8) / q_max      # exact divide, per channel
        zero = jnp.round(-x_min / scale)                      # exact divide, per channel
        inv_scale = 1.0 / scale                               # hoisted out of per-element path
        x_q = jnp.clip(jnp.round(x * inv_scale) + zero, 0.0, q_max)
        o_ref[...] = ((x_q - zero) * scale).astype(o_ref.dtype)


def quantizer_forward(x, n_bits: int = 8, channel_wise: bool = True):
    """JAX/Pallas equivalent of Quantizer(n_bits, channel_wise).forward(x) (first call)."""
    q_max = float(2 ** n_bits - 1)
    orig_shape = x.shape
    C = orig_shape[0] if channel_wise else 1
    x2 = x.reshape(C, -1)
    N = x2.shape[1]

    # ---- lane-dense packing: each channel -> (R_pad, 128) rows -------------
    R = _cdiv(N, _LANE)
    TR = min(_round_up(R, _SUBLANE), _MAX_TILE_ROWS)
    NT = _cdiv(R, TR)
    TR = _round_up(_cdiv(R, NT), _SUBLANE)   # rebalance tiles to limit padding waste
    NT = _cdiv(R, TR)
    R_pad = NT * TR
    N_pad = R_pad * _LANE

    if N_pad != N:
        # Pad each channel with its own first element: neutral for both min and
        # max, and the padded outputs are sliced away below.  The common
        # conv/activation sizes (per-channel size a multiple of 1024) skip this.
        fill = jnp.broadcast_to(x2[:, :1], (C, N_pad - N))
        x2 = jnp.concatenate([x2, fill], axis=1)
    x3 = x2.reshape(C, R_pad, _LANE)

    out3 = pl.pallas_call(
        functools.partial(_quantizer_kernel, q_max=q_max),
        out_shape=jax.ShapeDtypeStruct((C, R_pad, _LANE), x.dtype),
        grid_spec=pltpu.PrefetchScalarGridSpec(
            num_scalar_prefetch=0,
            grid=(C, 2, NT),
            in_specs=[
                # The same x tiles are streamed in phase 0 (reduce) and phase 1 (quant).
                pl.BlockSpec((None, TR, _LANE), lambda ci, ph, ni: (ci, ni, 0)),
            ],
            # During phase 0 the output stays pinned on block (ci, 0) and is never
            # written (so no garbage write-back); phase 1 walks (ci, 0..NT-1).
            # No output block is ever revisited.
            out_specs=pl.BlockSpec((None, TR, _LANE), lambda ci, ph, ni: (ci, ni * ph, 0)),
            scratch_shapes=[
                pltpu.VMEM((1, 1), jnp.float32),   # running per-channel min
                pltpu.VMEM((1, 1), jnp.float32),   # running per-channel max
            ],
        ),
        compiler_params=pltpu.CompilerParams(
            dimension_semantics=("parallel", "arbitrary", "arbitrary"),
            vmem_limit_bytes=32 * 1024 * 1024,
        ),
    )(x3)

    out2 = out3.reshape(C, N_pad)
    if N_pad != N:
        out2 = out2[:, :N]
    return out2.reshape(orig_shape)


def _reference_forward(x, n_bits: int = 8, channel_wise: bool = True):
    """Pure-jnp reference mirroring the PyTorch forward.

    Note: like the kernel, quantization uses x * (1/scale); torch uses x / scale,
    which can differ by one quantization step only at exact .5 rounding ties.
    """
    q_max = float(2 ** n_bits - 1)
    c = x.shape[0] if channel_wise else 1
    x2 = x.reshape(c, -1).astype(jnp.float32)
    x_min = jnp.min(x2, axis=1, keepdims=True)
    x_max = jnp.max(x2, axis=1, keepdims=True)
    scale = jnp.maximum(x_max - x_min, 1e-8) / q_max
    zero = jnp.round(-x_min / scale)
    inv_scale = 1.0 / scale
    x_q = jnp.clip(jnp.round(x2 * inv_scale) + zero, 0.0, q_max)
    return ((x_q - zero) * scale).astype(x.dtype).reshape(x.shape)


if __name__ == "__main__":
    key = jax.random.PRNGKey(0)
    # Small NCHW-style tensor consistent with the module's usage.
    x = jax.random.normal(key, (2, 4, 16, 16), dtype=jnp.float32)

    # channel-wise fake quant
    y = jax.block_until_ready(quantizer_forward(x, n_bits=8, channel_wise=True))
    y_ref = _reference_forward(x, n_bits=8, channel_wise=True)
    assert y.shape == x.shape and y.dtype == x.dtype
    assert jnp.allclose(y, y_ref, atol=1e-5, rtol=1e-5)

    # tensor-wise fake quant (channel_wise=False path)
    y_t = jax.block_until_ready(quantizer_forward(x, n_bits=8, channel_wise=False))
    y_t_ref = _reference_forward(x, n_bits=8, channel_wise=False)
    assert jnp.allclose(y_t, y_t_ref, atol=1e-5, rtol=1e-5)

    # TODO(synk): running_stat / act_momentum_update (EMA across calls) and
    # leaf_param Parameter state are training-time cross-call statefulness, not
    # part of the single-call forward hot path implemented here.
    print("KERNEL_OK")
</pallas_src>

<mosaic_0001>
module attributes {stable_mosaic.version = 11 : i64} {
  func.func @_quantizer_kernel(%arg0: i32, %arg1: i32, %arg2: i32, %arg3: memref<1x8x128xf32, #tpu.memory_space<vmem>>, %arg4: memref<1x8x128xf32, #tpu.memory_space<vmem>>, %arg5: memref<1x1xf32, #tpu.memory_space<vmem>>, %arg6: memref<1x1xf32, #tpu.memory_space<vmem>>) attributes {dimension_semantics = [#tpu.dimension_semantics<parallel>, #tpu.dimension_semantics<arbitrary>, #tpu.dimension_semantics<arbitrary>], iteration_bounds = array<i64: 2, 2, 1>, scalar_prefetch = 0 : i64, scratch_operands = 2 : i64, tpu.core_type = #tpu.core_type<tc>, window_params = [{transform_indices = @transform_0, window_bounds = array<i64: 1, 8, 128>}, {transform_indices = @transform_1, window_bounds = array<i64: 1, 8, 128>}]} {
    %c0 = arith.constant 0 : index
    %c0_0 = arith.constant 0 : index
    %c0_1 = arith.constant 0 : index
    %0 = vector.load %arg3[%c0, %c0_0, %c0_1] : memref<1x8x128xf32, #tpu.memory_space<vmem>>, vector<1x8x128xf32>
    %1 = vector.shape_cast %0 : vector<1x8x128xf32> to vector<8x128xf32>
    %c0_i32 = arith.constant 0 : i32
    %2 = arith.cmpi eq, %arg1, %c0_i32 : i32
    %3 = arith.extui %2 : i1 to i32
    %c0_i32_2 = arith.constant 0 : i32
    %4 = arith.cmpi ne, %3, %c0_i32_2 : i32
    scf.if %4 {
      %c0_i32_4 = arith.constant 0 : i32
      %8 = arith.cmpi eq, %arg2, %c0_i32_4 : i32
      %9 = arith.extui %8 : i1 to i32
      %c0_i32_5 = arith.constant 0 : i32
      %10 = arith.cmpi ne, %9, %c0_i32_5 : i32
      scf.if %10 {
        %cst_15 = arith.constant 0x7F800000 : f32
        %27 = vector.broadcast %cst_15 : f32 to vector<1x1xf32>
        %c0_16 = arith.constant 0 : index
        %c0_17 = arith.constant 0 : index
        %28 = vector.load %arg5[%c0_16, %c0_17] : memref<1x1xf32, #tpu.memory_space<vmem>>, vector<1x1xf32>
        tpu.vector_store %arg5[%c0_16, %c0_17], %27 {strides = array<i32>} : memref<1x1xf32, #tpu.memory_space<vmem>>, vector<1x1xf32>,
        %cst_18 = arith.constant 0xFF800000 : f32
        %29 = vector.broadcast %cst_18 : f32 to vector<1x1xf32>
        %c0_19 = arith.constant 0 : index
        %c0_20 = arith.constant 0 : index
        %30 = vector.load %arg6[%c0_19, %c0_20] : memref<1x1xf32, #tpu.memory_space<vmem>>, vector<1x1xf32>
        tpu.vector_store %arg6[%c0_19, %c0_20], %29 {strides = array<i32>} : memref<1x1xf32, #tpu.memory_space<vmem>>, vector<1x1xf32>,
      } else {
      }
      %c0_6 = arith.constant 0 : index
      %c0_7 = arith.constant 0 : index
      %11 = vector.load %arg5[%c0_6, %c0_7] : memref<1x1xf32, #tpu.memory_space<vmem>>, vector<1x1xf32>
      %12 = vector.shape_cast %1 : vector<8x128xf32> to vector<1x8x128xf32>
      %cst = arith.constant dense<0x7F800000> : vector<1xf32>
      %13 = vector.multi_reduction <minimumf>, %12, %cst [1, 2] : vector<1x8x128xf32> to vector<1xf32>
      %14 = vector.shape_cast %13 : vector<1xf32> to vector<1x1x1xf32>
      %15 = vector.extract %14[0, 0, 0] : f32 from vector<1x1x1xf32>
      %16 = vector.broadcast %15 : f32 to vector<1x1xf32>
      %17 = arith.minimumf %11, %16 : vector<1x1xf32>
      %c0_8 = arith.constant 0 : index
      %c0_9 = arith.constant 0 : index
      %18 = vector.load %arg5[%c0_8, %c0_9] : memref<1x1xf32, #tpu.memory_space<vmem>>, vector<1x1xf32>
      tpu.vector_store %arg5[%c0_8, %c0_9], %17 {strides = array<i32>} : memref<1x1xf32, #tpu.memory_space<vmem>>, vector<1x1xf32>,
      %c0_10 = arith.constant 0 : index
      %c0_11 = arith.constant 0 : index
      %19 = vector.load %arg6[%c0_10, %c0_11] : memref<1x1xf32, #tpu.memory_space<vmem>>, vector<1x1xf32>
      %20 = vector.shape_cast %1 : vector<8x128xf32> to vector<1x8x128xf32>
      %cst_12 = arith.constant dense<0xFF800000> : vector<1xf32>
      %21 = vector.multi_reduction <maximumf>, %20, %cst_12 [1, 2] : vector<1x8x128xf32> to vector<1xf32>
      %22 = vector.shape_cast %21 : vector<1xf32> to vector<1x1x1xf32>
      %23 = vector.extract %22[0, 0, 0] : f32 from vector<1x1x1xf32>
      %24 = vector.broadcast %23 : f32 to vector<1x1xf32>
      %25 = arith.maximumf %19, %24 : vector<1x1xf32>
      %c0_13 = arith.constant 0 : index
      %c0_14 = arith.constant 0 : index
      %26 = vector.load %arg6[%c0_13, %c0_14] : memref<1x1xf32, #tpu.memory_space<vmem>>, vector<1x1xf32>
      tpu.vector_store %arg6[%c0_13, %c0_14], %25 {strides = array<i32>} : memref<1x1xf32, #tpu.memory_space<vmem>>, vector<1x1xf32>,
    } else {
    }
    %c1_i32 = arith.constant 1 : i32
    %5 = arith.cmpi eq, %arg1, %c1_i32 : i32
    %6 = arith.extui %5 : i1 to i32
    %c0_i32_3 = arith.constant 0 : i32
    %7 = arith.cmpi ne, %6, %c0_i32_3 : i32
    scf.if %7 {
      %c0_4 = arith.constant 0 : index
      %c0_5 = arith.constant 0 : index
      %8 = vector.load %arg5[%c0_4, %c0_5] : memref<1x1xf32, #tpu.memory_space<vmem>>, vector<1x1xf32>
      %c0_6 = arith.constant 0 : index
      %c0_7 = arith.constant 0 : index
      %9 = vector.load %arg6[%c0_6, %c0_7] : memref<1x1xf32, #tpu.memory_space<vmem>>, vector<1x1xf32>
      %10 = arith.subf %9, %8 : vector<1x1xf32>
      %cst = arith.constant 9.99999993E-9 : f32
      %11 = vector.broadcast %cst : f32 to vector<1x1xf32>
      %12 = arith.maximumf %10, %11 : vector<1x1xf32>
      %cst_8 = arith.constant 2.550000e+02 : f32
      %13 = vector.broadcast %cst_8 : f32 to vector<1x1xf32>
      %14 = arith.divf %12, %13 : vector<1x1xf32>
      %cst_9 = arith.constant 0.000000e+00 : f32
      %15 = vector.broadcast %cst_9 : f32 to vector<1x1xf32>
      %16 = arith.subf %15, %8 : vector<1x1xf32>
      %17 = arith.divf %16, %14 : vector<1x1xf32>
      %18 = math.roundeven %17 : vector<1x1xf32>
      %cst_10 = arith.constant 1.000000e+00 : f32
      %19 = vector.broadcast %cst_10 : f32 to vector<1x1xf32>
      %20 = arith.divf %19, %14 : vector<1x1xf32>
      %21 = vector.broadcast %20 : vector<1x1xf32> to vector<8x128xf32>
      %22 = arith.mulf %1, %21 : vector<8x128xf32>
      %23 = math.roundeven %22 : vector<8x128xf32>
      %24 = vector.broadcast %18 : vector<1x1xf32> to vector<8x128xf32>
      %25 = arith.addf %23, %24 : vector<8x128xf32>
      %cst_11 = arith.constant 0.000000e+00 : f32
      %cst_12 = arith.constant 2.550000e+02 : f32
      %26 = vector.broadcast %cst_11 : f32 to vector<8x128xf32>
      %27 = arith.maximumf %26, %25 : vector<8x128xf32>
      %28 = vector.broadcast %cst_12 : f32 to vector<8x128xf32>
      %29 = arith.minimumf %28, %27 : vector<8x128xf32>
      %30 = vector.broadcast %18 : vector<1x1xf32> to vector<8x128xf32>
      %31 = arith.subf %29, %30 : vector<8x128xf32>
      %32 = vector.broadcast %14 : vector<1x1xf32> to vector<8x128xf32>
      %33 = arith.mulf %31, %32 : vector<8x128xf32>
      %c0_13 = arith.constant 0 : index
      %c0_14 = arith.constant 0 : index
      %c0_15 = arith.constant 0 : index
      %34 = vector.load %arg4[%c0_13, %c0_14, %c0_15] : memref<1x8x128xf32, #tpu.memory_space<vmem>>, vector<1x8x128xf32>
      %35 = vector.shape_cast %34 : vector<1x8x128xf32> to vector<8x128xf32>
      %36 = vector.shape_cast %33 : vector<8x128xf32> to vector<1x8x128xf32>
      tpu.vector_store %arg4[%c0_13, %c0_14, %c0_15], %36 {strides = array<i32>} : memref<1x8x128xf32, #tpu.memory_space<vmem>>, vector<1x8x128xf32>,
    } else {
    }
    return
  }
  func.func @transform_0(%arg0: i32, %arg1: i32, %arg2: i32) -> (i32, i32, i32) {
    %c0_i32 = arith.constant 0 : i32
    %c0_i32_0 = arith.constant 0 : i32
    return %arg0, %arg2, %c0_i32 : i32, i32, i32
  }
  func.func @transform_1(%arg0: i32, %arg1: i32, %arg2: i32) -> (i32, i32, i32) {
    %0 = arith.muli %arg2, %arg1 : i32
    %c0_i32 = arith.constant 0 : i32
    %c0_i32_0 = arith.constant 0 : i32
    return %arg0, %0, %c0_i32 : i32, i32, i32
  }
}

</mosaic_0001>

<llo_original>
// kernel: tpu_custom_call.1
$region0: #{tpu_custom_call.1}
  #allocation0 [shape = 'u32[]', space=smem, size = 0x4, offset = 0x4, fixed_abs, tag = 'smem constant byte address 0x4 - core index']
  #allocation1 [shape = 'u32[144,128]{1,0:T(1,128)}', space=vmem, size = 0x12000, scoped, tag = 'internal scratch']
  #allocation2 [shape = 'f32[1,1]{1,0:T(1,128)}', space=vmem, size = 0x200, scoped, tag = 'scratch operand']
  #allocation3 [shape = 'f32[1,1]{1,0:T(1,128)}', space=vmem, size = 0x200, scoped, tag = 'scratch operand']
  %s0 = inlined_call_operand.hbm [shape: f32[2,8,128], index: 0, kind: input, shape index: {}]
  %s1 = inlined_call_operand.hbm [shape: f32[2,8,128], index: 1, kind: output, shape index: {}]
  %s2 = sld [smem:[#allocation0]]
  $region53: #{tpu_custom_call.1} parent=0
    _
  %s4 = ssub.s32 1, %s2
  %s5 = scalar_select 0, %s4, %s2
  $region1: #{tpu_custom_call.1} parent=0
    #allocation4 [shape = 'u8[8192]{0}', space=vmem, size = 0x2000, scoped, tag = 'input window, operand 0']
    #allocation5 [shape = 's32[2]{0}', space=sflag, size = 0x8, scoped, tag = 'scoped memory for tpu_custom_call.1']
    #allocation6 [shape = 's32[2]{0}', space=sflag, size = 0x8, scoped, tag = 'scoped memory for tpu_custom_call.1']
    #allocation7 [shape = 'u8[8192]{0}', space=vmem, size = 0x2000, scoped, tag = 'output window, operand 0']
    %6 = vsyncpa [#allocation5], 0
    %s7 = scalar_lea.sflag [#allocation5], 1
    %8 = vsyncpa %s7, 0
    %9 = vsyncpa [#allocation6], 0
    %s10 = scalar_lea.sflag [#allocation6], 1
    %11 = vsyncpa %s10, 0
    loop: start=0, step=1, limit=6
    $region2: #{tpu_custom_call.1} parent=1 // loop_pre_header
      _
    $region3: #{tpu_custom_call.1} parent=1 // loop_header
      %s13 = sphi 0, %s17
      %p14 = scmp.ge.s32.totalorder %s13, 6
      %s20 = sphi 0, %s39
      %s21 = sphi 0, %s35
      %s22 = sphi 0, %s31
      %s23 = sphi 0, %s20
      %s24 = sphi 0, %s21
      %s25 = sphi 0, %s22
      %s26 = sphi 0, %s23
      %s27 = sphi 0, %s24
      %s28 = sphi 0, %s25
      %s44 = sphi 0, %s46
      %s47 = sphi 0, %s44
      %s48 = sphi 0, %s47
      %s64 = sphi 0, %s48
      %s74 = sphi 0, %s76
      %s77 = sphi 0, %s74
      %s78 = sphi 0, %s77
      %s94 = sphi 0, %s78
    $region4: #{tpu_custom_call.1} parent=1 // loop_header_branch
      %16 = sbr.rel (%p14) target = $region8
    $region5: #{tpu_custom_call.1} parent=1 // loop_body
      %s18 = ssub.s32 %s13, 1
      %s19 = ssub.s32 %s13, 2
      %s29 = sadd.s32 1, %s22
      %p30 = scmp.ge.s32.totalorder %s29, 1
      %s31 = scalar_select %p30, 0, %s29
      %s32 = sadd.s32 1, %s21
      %s33 = scalar_select %p30, %s32, %s21
      %p34 = scmp.ge.s32.totalorder %s33, 2
      %s35 = scalar_select %p34, 0, %s33
      %s36 = sadd.s32 1, %s20
      %s37 = scalar_select %p34, %s36, %s20
      %p38 = scmp.ge.s32.totalorder %s37, 2
      %s39 = scalar_select %p38, 0, %s37
      %s40 = ssub.s32 %s20, %s39
      %s41 = ssub.s32 %s22, %s31
      %s42 = sor.u32 %s40, %s41
      %p43 = scmp.eq.s32.totalorder %s42, 0
      %s45 = sadd.s32 %s44, 1
      %s46 = scalar_select %p43, %s44, %s45
      %p49 = pneg %p43
      %p50 = scmp.eq.s32.totalorder %s13, 3
      %p51 = por %p49, %p50
      %p52 = scmp.ne.s32.totalorder %s44, %s47
      %p53 = scmp.eq.s32.totalorder %s13, 0
      %p54 = por %p52, %p53
      %p55 = scmp.ne.s32.totalorder %s44, %s47
      %p56 = scmp.eq.s32.totalorder %s18, 3
      %p57 = por %p55, %p56
      %p58 = scmp.ne.s32.totalorder %s47, %s48
      %p59 = scmp.eq.s32.totalorder %s18, 0
      %p60 = por %p58, %p59
      %p61 = scmp.ne.s32.totalorder %s47, %s48
      %p62 = scmp.eq.s32.totalorder %s19, 3
      %p63 = por %p61, %p62
      %p65 = scmp.ne.s32.totalorder %s48, %s64
      %p66 = scmp.eq.s32.totalorder %s19, 0
      %p67 = por %p65, %p66
      %s68 = smul.u32 %s22, %s21
      %s69 = smul.u32 %s31, %s35
      %s70 = ssub.s32 %s20, %s39
      %s71 = ssub.s32 %s68, %s69
      %s72 = sor.u32 %s70, %s71
      %p73 = scmp.eq.s32.totalorder %s72, 0
      %s75 = sadd.s32 %s74, 1
      %s76 = scalar_select %p73, %s74, %s75
      %p79 = pneg %p73
      %p80 = scmp.eq.s32.totalorder %s13, 3
      %p81 = por %p79, %p80
      %p82 = scmp.ne.s32.totalorder %s74, %s77
      %p83 = scmp.eq.s32.totalorder %s13, 0
      %p84 = por %p82, %p83
      %p85 = scmp.ne.s32.totalorder %s74, %s77
      %p86 = scmp.eq.s32.totalorder %s18, 3
      %p87 = por %p85, %p86
      %p88 = scmp.ne.s32.totalorder %s77, %s78
      %p89 = scmp.eq.s32.totalorder %s18, 0
      %p90 = por %p88, %p89
      %p91 = scmp.ne.s32.totalorder %s77, %s78
      %p92 = scmp.eq.s32.totalorder %s19, 3
      %p93 = por %p91, %p92
      %p95 = scmp.ne.s32.totalorder %s78, %s94
      %p96 = scmp.eq.s32.totalorder %s19, 0
      %p97 = por %p95, %p96
      %p98 = scmp.le.s32.totalorder 1, %s13
      %p99 = scmp.lt.s32.totalorder %s13, 5
      %p100 = pnand %p98, %p99
      %p101 = pneg %p100
      // Predicated region
      $region9: #{tpu_custom_call.1} parent=5 // pred_check
        _
      $region10: #{tpu_custom_call.1} parent=5 // pred_check_branch
        %103 = sbr.rel (%p100) target = $region12
      $region11: #{tpu_custom_call.1} parent=5 // pred_region
        %s104 = ssub.s32 %s13, 1
      $region12: #{tpu_custom_call.1} parent=5 // pred_fallthru
        _
      %p105 = scmp.lt.s32.totalorder %s13, 4
      // Predicated region
      $region13: #{tpu_custom_call.1} parent=5 // pred_check
        %p106 = pneg %p105
      $region14: #{tpu_custom_call.1} parent=5 // pred_check_branch
        %108 = sbr.rel (%p106) target = $region16
      $region15: #{tpu_custom_call.1} parent=5 // pred_region
        // Predicated region
        $region17: #{tpu_custom_call.1} parent=15 // pred_check
          %p109 = pneg %p54
        $region18: #{tpu_custom_call.1} parent=15 // pred_check_branch
          %111 = sbr.rel (%p109) target = $region20
        $region19: #{tpu_custom_call.1} parent=15 // pred_region
          %s112 = sand.u32 %s44, 1
          %s113 = scalar_lea.sflag [#allocation5], %s112
          %s114 = sand.u32 %s44, 1
          %s115 = smul.addr %s114, 8
          %s116 = scalar_lea.vmem [#allocation4], %s115
          %s118 = ssub.s32 128, 128
          %119 = vsyncadd %s113, %s118
          %s120 = sadd.s32 %s22, %s20
          %s121 = smul.addr %s120, 128
          %s122 = scalar_lea.hbm %s0, %s121
          %s124 = sshll.u32 %s116, 4
          %s125 = int_to_ptr.vmem [resolvable:$true] %s124
          %127 = dma.hbm_to_vmem [thread:$0]  %s122, 128, %s125, %s113
        $region20: #{tpu_custom_call.1} parent=15 // pred_fallthru
          _
      $region16: #{tpu_custom_call.1} parent=5 // pred_fallthru
        _
      %p128 = scmp.le.s32.totalorder 1, %s13
      %p129 = scmp.lt.s32.totalorder %s13, 5
      %p130 = pnand %p128, %p129
      %p131 = pneg %p130
      // Predicated region
      $region21: #{tpu_custom_call.1} parent=5 // pred_check
        _
      $region22: #{tpu_custom_call.1} parent=5 // pred_check_branch
        %133 = sbr.rel (%p130) target = $region24
      $region23: #{tpu_custom_call.1} parent=5 // pred_region
        %s134 = ssub.s32 %s13, 1
        %s135 = sand.u32 %s47, 1
        %s136 = scalar_lea.sflag [#allocation5], %s135
        %s137 = sand.u32 %s47, 1
        %s138 = smul.addr %s137, 8
        %s139 = scalar_lea.vmem [#allocation4], %s138
        // Predicated region
        $region25: #{tpu_custom_call.1} parent=23 // pred_check
          %p140 = pneg %p60
        $region26: #{tpu_custom_call.1} parent=23 // pred_check_branch
          %142 = sbr.rel (%p140) target = $region28
        $region27: #{tpu_custom_call.1} parent=23 // pred_region
          %143 = dma.done %s136, 128
        $region28: #{tpu_custom_call.1} parent=23 // pred_fallthru
          _
        %s144 = sand.u32 %s47, 1
        %s145 = scalar_lea.sflag [#allocation5], %s144
        %s146 = sand.u32 %s47, 1
        %s147 = smul.addr %s146, 8
        %s148 = scalar_lea.vmem [#allocation4], %s147
        %p149 = pneg %p60
        %p150 = pneg %p57
        %p151 = pneg %p90
        %p152 = pneg %p87
        %s153 = sand.u32 %s77, 1
        %s154 = scalar_lea.sflag [#allocation6], %s153
        %s155 = sand.u32 %s77, 1
        %s156 = smul.addr %s155, 8
        %s157 = scalar_lea.vmem [#allocation7], %s156
        %s158 = smul.u32 %s25, %s24
        %v159 = vld [vmem:[%s139] sm:$0xff]
        %p160 = scmp.eq.s32.totalorder %s24, 0
        // Predicated region
        $region29: #{tpu_custom_call.1} parent=23 // pred_check
          %p161 = pneg %p160
        $region30: #{tpu_custom_call.1} parent=23 // pred_check_branch
          %163 = sbr.rel (%p161) target = $region32
        $region31: #{tpu_custom_call.1} parent=23 // pred_region
          %p164 = scmp.eq.s32.totalorder %s25, 0
          // Predicated region
          $region33: #{tpu_custom_call.1} parent=31 // pred_check
            %p165 = pneg %p164
          $region34: #{tpu_custom_call.1} parent=31 // pred_check_branch
            %167 = sbr.rel (%p165) target = $region36
          $region35: #{tpu_custom_call.1} parent=31 // pred_region
            %vm168 = vcmask 0
            %169 = vst.msk [vmem:[#allocation2] sm:$0x1] %vm168, inf
            %170 = vst.msk [vmem:[#allocation3] sm:$0x1] %vm168, -inf
          $region36: #{tpu_custom_call.1} parent=31 // pred_fallthru
            _
          %v171 = vld [vmem:[#allocation2] sm:$0x1]
          %172 = vmin.xlane.f32.xlu0 %v159
          %v173 = vpop.xlane.xlu0 %172
          %v174 = vrot.slane %v173, 4
          %v175 = vmin.f32 %v173, %v174
          %v176 = vrot.slane %v175, 2
          %v177 = vmin.f32 %v175, %v176
          %v178 = vrot.slane %v177, 1
          %v179 = vmin.f32 %v177, %v178
          %s180 = vtos %v179
          %v181 = vstv %s180
          %v182 = vmin.f32 %v171, %v181
          %vm183 = vcmask 0
          %184 = vst.msk [vmem:[#allocation2] sm:$0x1] %vm183, %v182
          %v185 = vld [vmem:[#allocation3] sm:$0x1]
          %186 = vmax.xlane.f32.xlu0 %v159
          %v187 = vpop.xlane.xlu0 %186
          %v188 = vrot.slane %v187, 4
          %v189 = vmax.f32 %v187, %v188
          %v190 = vrot.slane %v189, 2
          %v191 = vmax.f32 %v189, %v190
          %v192 = vrot.slane %v191, 1
          %v193 = vmax.f32 %v191, %v192
          %s194 = vtos %v193
          %v195 = vstv %s194
          %v196 = vmax.f32 %v185, %v195
          %197 = vst.msk [vmem:[#allocation3] sm:$0x1] %vm183, %v196
        $region32: #{tpu_custom_call.1} parent=23 // pred_fallthru
          _
        %p198 = scmp.eq.s32.totalorder %s24, 1
        // Predicated region
        $region37: #{tpu_custom_call.1} parent=23 // pred_check
          %p199 = pneg %p198
        $region38: #{tpu_custom_call.1} parent=23 // pred_check_branch
          %201 = sbr.rel (%p199) target = $region40
        $region39: #{tpu_custom_call.1} parent=23 // pred_region
          %v202 = vld [vmem:[#allocation2] sm:$0x1]
          %v203 = vld [vmem:[#allocation3] sm:$0x1]
          %v204 = vsub.f32 %v203, %v202
          %v205 = vmax.f32 %v204, 1e-08
          %v206 = vrcp.pop 255.0
          %v207 = vmul.f32 %v205, %v206
          %v208 = vsub.f32 0.0, %v202
          %v209 = vrcp.pop %v207
          %v210 = vmul.f32 %v208, %v209
          %v211 = vround.ne.pseudo %v210
          %v212 = vmul.f32 1.0, %v209
          %v214 = vlaneseq
          %v215 = vshrl.u32 %v214, 7
          %v216 = vsub.s32 0, %v215
          %v217 = vrot.slane %v212, %v216
          %218 = vset.pattern.permute.xlu0 0
          %219 = vperm.xlu0 %218, %v217
          %v220 = vpop.permute.xlu0 %219
          %v222 = vmul.f32 %v159, %v220
          %v223 = vround.ne.pseudo %v222
          %v225 = vlaneseq
          %v226 = vshrl.u32 %v225, 7
          %v227 = vsub.s32 0, %v226
          %v228 = vrot.slane %v211, %v227
          %229 = vset.pattern.permute.xlu0 0
          %230 = vperm.xlu0 %229, %v228
          %v231 = vpop.permute.xlu0 %230
          %v233 = vadd.f32 %v223, %v231
          %v234 = vmax.f32 %v233, 0.0
          %v235 = vmin.f32 %v234, 255.0
          %v236 = vsub.f32 %v235, %v231
          %v238 = vlaneseq
          %v239 = vshrl.u32 %v238, 7
          %v240 = vsub.s32 0, %v239
          %v241 = vrot.slane %v207, %v240
          %242 = vset.pattern.permute.xlu0 0
          %243 = vperm.xlu0 %242, %v241
          %v244 = vpop.permute.xlu0 %243
          %v246 = vmul.f32 %v236, %v244
          %247 = vst [vmem:[%s157] sm:$0xff] %v246
        $region40: #{tpu_custom_call.1} parent=23 // pred_fallthru
          _
        %s248 = sand.u32 %s77, 1
        %s249 = scalar_lea.sflag [#allocation6], %s248
        %s250 = sand.u32 %s77, 1
        %s251 = smul.addr %s250, 8
        %s252 = scalar_lea.vmem [#allocation7], %s251
        // Predicated region
        $region41: #{tpu_custom_call.1} parent=23 // pred_check
          %p253 = pneg %p87
        $region42: #{tpu_custom_call.1} parent=23 // pred_check_branch
          %255 = sbr.rel (%p253) target = $region44
        $region43: #{tpu_custom_call.1} parent=23 // pred_region
          %s256 = smul.u32 %s25, %s24
          %s258 = ssub.s32 128, 128
          %259 = vsyncadd %s249, %s258
          %s260 = sadd.s32 %s256, %s23
          %s261 = smul.addr %s260, 128
          %s262 = scalar_lea.hbm %s1, %s261
          %s264 = sshll.u32 %s252, 4
          %s265 = int_to_ptr.vmem [resolvable:$true] %s264
          %267 = dma.vmem_to_hbm [thread:$0]  %s265, 128, %s262, %s249
        $region44: #{tpu_custom_call.1} parent=23 // pred_fallthru
          _
      $region24: #{tpu_custom_call.1} parent=5 // pred_fallthru
        _
      %p268 = scmp.le.s32.totalorder 2, %s13
      // Predicated region
      $region45: #{tpu_custom_call.1} parent=5 // pred_check
        %p269 = pneg %p268
      $region46: #{tpu_custom_call.1} parent=5 // pred_check_branch
        %271 = sbr.rel (%p269) target = $region48
      $region47: #{tpu_custom_call.1} parent=5 // pred_region
        %s272 = ssub.s32 %s13, 2
        // Predicated region
        $region49: #{tpu_custom_call.1} parent=47 // pred_check
          %p273 = pneg %p93
        $region50: #{tpu_custom_call.1} parent=47 // pred_check_branch
          %275 = sbr.rel (%p273) target = $region52
        $region51: #{tpu_custom_call.1} parent=47 // pred_region
          %s276 = sand.u32 %s78, 1
          %s277 = scalar_lea.sflag [#allocation6], %s276
          %s278 = sand.u32 %s78, 1
          %s279 = smul.addr %s278, 8
          %s280 = scalar_lea.vmem [#allocation7], %s279
          %281 = dma.done %s277, 128
        $region52: #{tpu_custom_call.1} parent=47 // pred_fallthru
          _
      $region48: #{tpu_custom_call.1} parent=5 // pred_fallthru
        _
    $region6: #{tpu_custom_call.1} parent=1 // loop_footer
      %s17 = sadd.s32 1, %s13
    $region7: #{tpu_custom_call.1} parent=1 // loop_footer_branch
      %12 = sbr.rel target = $region3
    $region8: #{tpu_custom_call.1} parent=1 // loop_exit
      _
    %282 = vsyncpa [#allocation5], 1
    %s283 = scalar_lea.sflag [#allocation5], 1
    %284 = vsyncpa %s283, 1
    %285 = vsyncpa [#allocation6], 1
    %s286 = scalar_lea.sflag [#allocation6], 1
    %287 = vsyncpa %s286, 1

</llo_original>
